<compile_context>
chip_gen: v6e
topology: v6e:2x2x1
jax: 0.10.0
libtpu: 0.0.40
codegen_flags: <defaults>
</compile_context>

<pallas_src>
import functools

import jax
import jax.numpy as jnp
from jax.experimental import pallas as pl
from jax.experimental.pallas import tpu as pltpu


def _round_up(n: int, m: int) -> int:
    return ((n + m - 1) // m) * m


def mlp_kernel(x_ref, w1_ref, b1_ref, w2_ref, b2_ref, o_ref):
    # Hidden layer: (TB, D_in) @ (D_in, H_pad) -> f32 accumulate, bias + ReLU in f32.
    h = jnp.dot(x_ref[...], w1_ref[...], preferred_element_type=jnp.float32)
    h = jnp.maximum(h + b1_ref[...], 0.0)
    # Output layer: (TB, H_pad) @ (H_pad, C_pad) -> f32 accumulate.
    out = jnp.dot(h.astype(w2_ref.dtype), w2_ref[...],
                  preferred_element_type=jnp.float32)
    # Store only the real n_classes columns (narrow store: tiny HBM writeback).
    C = o_ref.shape[-1]
    o_ref[...] = (out[:, :C] + b2_ref[...]).astype(o_ref.dtype)


@functools.partial(jax.jit, static_argnames=("tb_max", "compute_dtype"))
def torch_mlp_forward(x, w1, b1, w2, b2, *, tb_max: int = 4096, compute_dtype=None):
    """Forward pass of TorchMLP.

    x:  (B, D_in)
    w1: (D_in, H)   b1: (1, H)
    w2: (H, C)      b2: (1, C)
    compute_dtype: None (exact f32) or jnp.bfloat16 to halve x-stream traffic / use
                   bf16 MXU inputs (accumulation and epilogue remain f32).
    """
    B, D_in = x.shape
    H, C = w2.shape
    out_dtype = x.dtype

    # --- Lane-align the small contraction dims (zero padding is numerically exact). ---
    H_pad = _round_up(H, 128)
    C_pad = _round_up(C, 128)           # only for the in-VMEM weight / matmul shape
    w1p = jnp.pad(w1, ((0, 0), (0, H_pad - H)))
    b1p = jnp.pad(b1, ((0, 0), (0, H_pad - H)))
    w2p = jnp.pad(w2, ((0, H_pad - H), (0, C_pad - C)))

    # --- Optional bf16 matmul inputs (accumulation + epilogue stay f32 in-kernel). ---
    if compute_dtype is not None:
        x_in = x.astype(compute_dtype)
        w1p = w1p.astype(compute_dtype)
        w2p = w2p.astype(compute_dtype)
    else:
        x_in = x
    b1p = b1p.astype(jnp.float32)
    b2p = b2.astype(jnp.float32)        # kept at true width (1, C)

    # --- Batch tiling: TB rows per grid step; no padding of x or out. ---
    if B >= 256:
        # Split into >= 2 tiles so a "parallel" grid can feed both v7x TensorCores.
        TB = min(tb_max, _round_up((B + 1) // 2, 8))
    else:
        TB = min(tb_max, _round_up(B, 8))
    grid = (pl.cdiv(B, TB),)

    const_2d = lambda i: (0, 0)  # weights/biases: same block every step -> stay resident
    out = pl.pallas_call(
        mlp_kernel,
        out_shape=jax.ShapeDtypeStruct((B, C), out_dtype),
        grid=grid,
        in_specs=[
            pl.BlockSpec((TB, D_in), lambda i: (i, 0)),   # x: batch-tiled stream
            pl.BlockSpec((D_in, H_pad), const_2d),        # w1
            pl.BlockSpec((1, H_pad), const_2d),           # b1
            pl.BlockSpec((H_pad, C_pad), const_2d),       # w2
            pl.BlockSpec((1, C), const_2d),               # b2 (true width)
        ],
        out_specs=pl.BlockSpec((TB, C), lambda i: (i, 0)),  # narrow, unpadded store
        compiler_params=pltpu.CompilerParams(
            dimension_semantics=("parallel",),            # megacore sharding on v7x
        ),
    )(x_in, w1p, b1p, w2p, b2p)

    return out


def init_linear_params(key, fan_in, fan_out, dtype=jnp.float32):
    """PyTorch nn.Linear default init: U(-1/sqrt(fan_in), 1/sqrt(fan_in))."""
    k_w, k_b = jax.random.split(key)
    bound = 1.0 / jnp.sqrt(jnp.asarray(fan_in, dtype))
    # stored as (in, out) so kernel does x @ W
    w = jax.random.uniform(k_w, (fan_in, fan_out), dtype, minval=-bound, maxval=bound)
    b = jax.random.uniform(k_b, (1, fan_out), dtype, minval=-bound, maxval=bound)
    return w, b


def _ref_forward(x, w1, b1, w2, b2):
    return jnp.maximum(x @ w1 + b1, 0.0) @ w2 + b2


if __name__ == "__main__":
    # Small shapes consistent with the module: LazyLinear infers in_features from x.
    in_features = 32
    hidden = 100
    n_classes = 1

    key = jax.random.PRNGKey(0)
    k_x1, k_x2, k_l1, k_l2 = jax.random.split(key, 4)

    w1, b1 = init_linear_params(k_l1, in_features, hidden)
    w2, b2 = init_linear_params(k_l2, hidden, n_classes)

    # --- Case 1: tiny batch, single grid step, exact f32 path. ---
    x = jax.random.normal(k_x1, (8, in_features), dtype=jnp.float32)
    ref = _ref_forward(x, w1, b1, w2, b2)
    out = jax.block_until_ready(torch_mlp_forward(x, w1, b1, w2, b2))
    assert out.shape == (8, n_classes)
    assert jnp.allclose(out, ref, atol=1e-5, rtol=1e-5)

    # --- Case 2: batch not divisible by the tile (exercises the tail block / OOB drop). ---
    x2 = jax.random.normal(k_x2, (300, in_features), dtype=jnp.float32)
    ref2 = _ref_forward(x2, w1, b1, w2, b2)
    out2 = jax.block_until_ready(torch_mlp_forward(x2, w1, b1, w2, b2))
    assert out2.shape == (300, n_classes)
    assert jnp.allclose(out2, ref2, atol=1e-5, rtol=1e-5)

    # --- Case 3: bf16 matmul-input path (f32 accumulation) -> loose tolerance. ---
    out_bf16 = jax.block_until_ready(
        torch_mlp_forward(x2, w1, b1, w2, b2, compute_dtype=jnp.bfloat16)
    )
    assert out_bf16.shape == (300, n_classes)
    assert jnp.allclose(out_bf16, ref2, atol=1e-2, rtol=1e-2)

    print("KERNEL_OK")
</pallas_src>

<mosaic_0001>
module attributes {stable_mosaic.version = 11 : i64} {
  func.func @mlp_kernel(%arg0: i32, %arg1: memref<8x32xf32, #tpu.memory_space<vmem>>, %arg2: memref<32x128xf32, #tpu.memory_space<vmem>>, %arg3: memref<1x128xf32, #tpu.memory_space<vmem>>, %arg4: memref<128x128xf32, #tpu.memory_space<vmem>>, %arg5: memref<1x1xf32, #tpu.memory_space<vmem>>, %arg6: memref<8x1xf32, #tpu.memory_space<vmem>>) attributes {dimension_semantics = [#tpu.dimension_semantics<parallel>], iteration_bounds = array<i64: 1>, scalar_prefetch = 0 : i64, scratch_operands = 0 : i64, tpu.core_type = #tpu.core_type<tc>, window_params = [{transform_indices = @transform_0, window_bounds = array<i64: 8, 32>}, {pipeline_mode = #tpu.pipeline_mode<synchronous>, transform_indices = @transform_1, window_bounds = array<i64: 32, 128>}, {pipeline_mode = #tpu.pipeline_mode<synchronous>, transform_indices = @transform_2, window_bounds = array<i64: 1, 128>}, {pipeline_mode = #tpu.pipeline_mode<synchronous>, transform_indices = @transform_3, window_bounds = array<i64: 128, 128>}, {pipeline_mode = #tpu.pipeline_mode<synchronous>, transform_indices = @transform_4, window_bounds = array<i64: 1, 1>}, {transform_indices = @transform_5, window_bounds = array<i64: 8, 1>}]} {
    %c0 = arith.constant 0 : index
    %c0_0 = arith.constant 0 : index
    %0 = vector.load %arg1[%c0, %c0_0] : memref<8x32xf32, #tpu.memory_space<vmem>>, vector<8x32xf32>
    %c0_1 = arith.constant 0 : index
    %c0_2 = arith.constant 0 : index
    %1 = vector.load %arg2[%c0_1, %c0_2] : memref<32x128xf32, #tpu.memory_space<vmem>>, vector<32x128xf32>
    %cst = arith.constant dense<0.000000e+00> : vector<8x128xf32>
    %2 = tpu.matmul %0, %1, %cst {dimension_numbers = #tpu.dot_dimension_numbers<[1], [0], [0], [1], [0, 0, 1, 1], [], []>} : vector<8x32xf32>, vector<32x128xf32>, vector<8x128xf32> -> vector<8x128xf32>
    %c0_3 = arith.constant 0 : index
    %c0_4 = arith.constant 0 : index
    %3 = vector.load %arg3[%c0_3, %c0_4] : memref<1x128xf32, #tpu.memory_space<vmem>>, vector<1x128xf32>
    %4 = vector.broadcast %3 : vector<1x128xf32> to vector<8x128xf32>
    %5 = arith.addf %2, %4 : vector<8x128xf32>
    %cst_5 = arith.constant 0.000000e+00 : f32
    %6 = vector.broadcast %cst_5 : f32 to vector<8x128xf32>
    %7 = arith.maximumf %5, %6 : vector<8x128xf32>
    %c0_6 = arith.constant 0 : index
    %c0_7 = arith.constant 0 : index
    %8 = vector.load %arg4[%c0_6, %c0_7] : memref<128x128xf32, #tpu.memory_space<vmem>>, vector<128x128xf32>
    %cst_8 = arith.constant dense<0.000000e+00> : vector<8x128xf32>
    %9 = tpu.matmul %7, %8, %cst_8 {dimension_numbers = #tpu.dot_dimension_numbers<[1], [0], [0], [1], [0, 0, 1, 1], [], []>} : vector<8x128xf32>, vector<128x128xf32>, vector<8x128xf32> -> vector<8x128xf32>
    %10 = vector.extract_strided_slice %9 {offsets = [0, 0], sizes = [8, 1], strides = [1, 1]} : vector<8x128xf32> to vector<8x1xf32>
    %c0_9 = arith.constant 0 : index
    %c0_10 = arith.constant 0 : index
    %11 = vector.load %arg5[%c0_9, %c0_10] : memref<1x1xf32, #tpu.memory_space<vmem>>, vector<1x1xf32>
    %12 = vector.broadcast %11 : vector<1x1xf32> to vector<8x1xf32>
    %13 = arith.addf %10, %12 : vector<8x1xf32>
    %c0_11 = arith.constant 0 : index
    %c0_12 = arith.constant 0 : index
    %14 = vector.load %arg6[%c0_11, %c0_12] : memref<8x1xf32, #tpu.memory_space<vmem>>, vector<8x1xf32>
    tpu.vector_store %arg6[%c0_11, %c0_12], %13 {strides = array<i32>} : memref<8x1xf32, #tpu.memory_space<vmem>>, vector<8x1xf32>,
    return
  }
  func.func @transform_0(%arg0: i32) -> (i32, i32) {
    %c0_i32 = arith.constant 0 : i32
    %c0_i32_0 = arith.constant 0 : i32
    return %arg0, %c0_i32 : i32, i32
  }
  func.func @transform_1(%arg0: i32) -> (i32, i32) {
    %c0_i32 = arith.constant 0 : i32
    %c0_i32_0 = arith.constant 0 : i32
    %c0_i32_1 = arith.constant 0 : i32
    return %c0_i32, %c0_i32_0 : i32, i32
  }
  func.func @transform_2(%arg0: i32) -> (i32, i32) {
    %c0_i32 = arith.constant 0 : i32
    %c0_i32_0 = arith.constant 0 : i32
    %c0_i32_1 = arith.constant 0 : i32
    return %c0_i32, %c0_i32_0 : i32, i32
  }
  func.func @transform_3(%arg0: i32) -> (i32, i32) {
    %c0_i32 = arith.constant 0 : i32
    %c0_i32_0 = arith.constant 0 : i32
    %c0_i32_1 = arith.constant 0 : i32
    return %c0_i32, %c0_i32_0 : i32, i32
  }
  func.func @transform_4(%arg0: i32) -> (i32, i32) {
    %c0_i32 = arith.constant 0 : i32
    %c0_i32_0 = arith.constant 0 : i32
    %c0_i32_1 = arith.constant 0 : i32
    return %c0_i32, %c0_i32_0 : i32, i32
  }
  func.func @transform_5(%arg0: i32) -> (i32, i32) {
    %c0_i32 = arith.constant 0 : i32
    %c0_i32_0 = arith.constant 0 : i32
    return %arg0, %c0_i32 : i32, i32
  }
}

</mosaic_0001>

<llo_original>
// kernel: torch_mlp_forward.1
$region0: #{torch_mlp_forward.1}
  #allocation0 [shape = 'u32[]', space=smem, size = 0x4, offset = 0x4, fixed_abs, tag = 'smem constant byte address 0x4 - core index']
  #allocation1 [shape = 'u32[144,128]{1,0:T(1,128)}', space=vmem, size = 0x12000, scoped, tag = 'internal scratch']
  #allocation2 [shape = 'f32[1,1]{1,0:T(1,128)S(1)}', space=vmem, size = 0x200, scoped, tag = 'scoped memory for torch_mlp_forward.1']
  %s0 = inlined_call_operand.vmem [shape: f32[8,32], index: 0, kind: input, shape index: {}]
  %s1 = inlined_call_operand.vmem [shape: f32[32,128], index: 1, kind: input, shape index: {}]
  %s2 = inlined_call_operand.vmem [shape: f32[1,128], index: 2, kind: input, shape index: {}]
  %s3 = inlined_call_operand.vmem [shape: f32[128,128], index: 3, kind: input, shape index: {}]
  %s4 = inlined_call_operand.<no memory space> [shape: f32[1,1], index: 4, kind: input, shape index: {}]
  %s5 = inlined_call_operand.vmem [shape: f32[8,1], index: 5, kind: output, shape index: {}]
  %s6 = sld [smem:[#allocation0]]
  $region30: #{torch_mlp_forward.1} parent=0
    _
  %s8 = ssub.s32 1, %s6
  %s9 = scalar_select 0, %s8, %s6
  %v10 = vstv %s4
  %11 = vst [vmem:[#allocation2] sm:$0x1] %v10
  // Predicated region
  $region2: #{torch_mlp_forward.1} parent=0 // pred_check
    _
  $region3: #{torch_mlp_forward.1} parent=0 // pred_check_branch
    %13 = sbr.rel (0) target = $region5
  $region4: #{torch_mlp_forward.1} parent=0 // pred_region
    _
  $region5: #{torch_mlp_forward.1} parent=0 // pred_fallthru
    _
  // Predicated region
  $region6: #{torch_mlp_forward.1} parent=0 // pred_check
    _
  $region7: #{torch_mlp_forward.1} parent=0 // pred_check_branch
    %15 = sbr.rel (0) target = $region9
  $region8: #{torch_mlp_forward.1} parent=0 // pred_region
    _
  $region9: #{torch_mlp_forward.1} parent=0 // pred_fallthru
    _
  // Predicated region
  $region10: #{torch_mlp_forward.1} parent=0 // pred_check
    _
  $region11: #{torch_mlp_forward.1} parent=0 // pred_check_branch
    %17 = sbr.rel (0) target = $region13
  $region12: #{torch_mlp_forward.1} parent=0 // pred_region
    _
  $region13: #{torch_mlp_forward.1} parent=0 // pred_fallthru
    _
  // Predicated region
  $region14: #{torch_mlp_forward.1} parent=0 // pred_check
    _
  $region15: #{torch_mlp_forward.1} parent=0 // pred_check_branch
    %19 = sbr.rel (0) target = $region17
  $region16: #{torch_mlp_forward.1} parent=0 // pred_region
    _
  $region17: #{torch_mlp_forward.1} parent=0 // pred_fallthru
    _
  // Predicated region
  $region18: #{torch_mlp_forward.1} parent=0 // pred_check
    _
  $region19: #{torch_mlp_forward.1} parent=0 // pred_check_branch
    %21 = sbr.rel (0) target = $region21
  $region20: #{torch_mlp_forward.1} parent=0 // pred_region
    _
  $region21: #{torch_mlp_forward.1} parent=0 // pred_fallthru
    _
  %v22 = vld [vmem:[%s0] sm:$0xff]
  %v23 = vld [vmem:[%s1] sm:$0xff]
  %v24 = vld [vmem:[%s1 + $0x8] sm:$0xff]
  %v25 = vld [vmem:[%s1 + $0x10] sm:$0xff]
  %v26 = vld [vmem:[%s1 + $0x18] sm:$0xff]
  %v27 = vld [vmem:[%s2] sm:$0x1]
  %v29 = vlaneseq
  %v30 = vshrl.u32 %v29, 7
  %v31 = vsub.s32 0, %v30
  %v32 = vrot.slane %v27, %v31
  %vm34 = vcmask 261120
  %v36 = vsel %vm34, %v22, 0
  %38 = vmatprep.subr.mxu0 0.0
  %39 = vmatpush1.msra.mxu0 0.0
  %40 = vmatprep.subr.mxu0 0.0
  %41 = vmatpush1.msra.mxu0 0.0
  %42 = vmatprep.subr.mxu0 0.0
  %43 = vmatpush1.msra.mxu0 0.0
  %44 = vmatprep.subr.mxu0 0.0
  %45 = vmatpush1.msra.mxu0 0.0
  %46 = vmatprep.subr.mxu0 0.0
  %47 = vmatpush1.msra.mxu0 0.0
  %48 = vmatprep.subr.mxu0 0.0
  %49 = vmatpush1.msra.mxu0 0.0
  %50 = vmatprep.subr.mxu0 0.0
  %51 = vmatpush1.msra.mxu0 0.0
  %52 = vmatprep.subr.mxu0 0.0
  %53 = vmatpush1.msra.mxu0 0.0
  %54 = vmatprep.subr.mxu0 0.0
  %55 = vmatpush1.msra.mxu0 0.0
  %56 = vmatprep.subr.mxu0 0.0
  %57 = vmatpush1.msra.mxu0 0.0
  %58 = vmatprep.subr.mxu0 0.0
  %59 = vmatpush1.msra.mxu0 0.0
  %60 = vmatprep.subr.mxu0 0.0
  %61 = vmatpush1.msra.mxu0 0.0
  %62 = vmatprep.subr.mxu0 0.0
  %63 = vmatpush1.msra.mxu0 %v26
  %64 = vmatprep.subr.mxu0 0.0
  %65 = vmatpush1.msra.mxu0 %v25
  %66 = vmatprep.subr.mxu0 0.0
  %67 = vmatpush1.msra.mxu0 %v24
  %68 = vmatprep.subr.mxu0 0.0
  %69 = vmatpush1.msra.mxu0 %v23
  %70 = vmatprep.subr.mxu0 0.0
  %71 = vmatpush2.msra.mxu0 0.0
  %72 = vmatprep.subr.mxu0 0.0
  %73 = vmatpush2.msra.mxu0 0.0
  %74 = vmatprep.subr.mxu0 0.0
  %75 = vmatpush2.msra.mxu0 0.0
  %76 = vmatprep.subr.mxu0 0.0
  %77 = vmatpush2.msra.mxu0 0.0
  %78 = vmatprep.subr.mxu0 0.0
  %79 = vmatpush2.msra.mxu0 0.0
  %80 = vmatprep.subr.mxu0 0.0
  %81 = vmatpush2.msra.mxu0 0.0
  %82 = vmatprep.subr.mxu0 0.0
  %83 = vmatpush2.msra.mxu0 0.0
  %84 = vmatprep.subr.mxu0 0.0
  %85 = vmatpush2.msra.mxu0 0.0
  %86 = vmatprep.subr.mxu0 0.0
  %87 = vmatpush2.msra.mxu0 0.0
  %88 = vmatprep.subr.mxu0 0.0
  %89 = vmatpush2.msra.mxu0 0.0
  %90 = vmatprep.subr.mxu0 0.0
  %91 = vmatpush2.msra.mxu0 0.0
  %92 = vmatprep.subr.mxu0 0.0
  %93 = vmatpush2.msra.mxu0 0.0
  %94 = vmatprep.subr.mxu0 0.0
  %95 = vmatpush2.msra.mxu0 0.0
  %96 = vmatprep.subr.mxu0 0.0
  %97 = vmatpush2.msra.mxu0 0.0
  %98 = vmatprep.subr.mxu0 0.0
  %99 = vmatpush2.msra.mxu0 0.0
  %100 = vmatprep.subr.mxu0 0.0
  %101 = vmatpush2.msra.mxu0 0.0
  %102 = vmatprep.mubr.f32.mxu0 0.0
  %103 = vmatmul.mubr.f32.gmra.mxu0 %v36
  %v104 = vpop.f32.mrf.mxu0
  %v105 = vadd.f32 %v32, %v104
  %v106 = vpop.f32.mrf.mxu0
  %107 = vdwg.mxu0
  %v108 = vmax.f32 %v105, 0.0
  %v109 = vld [vmem:[%s3] sm:$0xff]
  %v110 = vld [vmem:[%s3 + $0x8] sm:$0xff]
  %v111 = vld [vmem:[%s3 + $0x10] sm:$0xff]
  %v112 = vld [vmem:[%s3 + $0x18] sm:$0xff]
  %v113 = vld [vmem:[%s3 + $0x20] sm:$0xff]
  %v114 = vld [vmem:[%s3 + $0x28] sm:$0xff]
  %v115 = vld [vmem:[%s3 + $0x30] sm:$0xff]
  %v116 = vld [vmem:[%s3 + $0x38] sm:$0xff]
  %v117 = vld [vmem:[%s3 + $0x40] sm:$0xff]
  %v118 = vld [vmem:[%s3 + $0x48] sm:$0xff]
  %v119 = vld [vmem:[%s3 + $0x50] sm:$0xff]
  %v120 = vld [vmem:[%s3 + $0x58] sm:$0xff]
  %v121 = vld [vmem:[%s3 + $0x60] sm:$0xff]
  %v122 = vld [vmem:[%s3 + $0x68] sm:$0xff]
  %v123 = vld [vmem:[%s3 + $0x70] sm:$0xff]
  %v124 = vld [vmem:[%s3 + $0x78] sm:$0xff]
  %125 = vmatprep.subr.mxu0 0.0
  %126 = vmatpush1.msra.mxu0 %v124
  %127 = vmatprep.subr.mxu0 0.0
  %128 = vmatpush1.msra.mxu0 %v123
  %129 = vmatprep.subr.mxu0 0.0
  %130 = vmatpush1.msra.mxu0 %v122
  %131 = vmatprep.subr.mxu0 0.0
  %132 = vmatpush1.msra.mxu0 %v121
  %133 = vmatprep.subr.mxu0 0.0
  %134 = vmatpush1.msra.mxu0 %v120
  %135 = vmatprep.subr.mxu0 0.0
  %136 = vmatpush1.msra.mxu0 %v119
  %137 = vmatprep.subr.mxu0 0.0
  %138 = vmatpush1.msra.mxu0 %v118
  %139 = vmatprep.subr.mxu0 0.0
  %140 = vmatpush1.msra.mxu0 %v117
  %141 = vmatprep.subr.mxu0 0.0
  %142 = vmatpush1.msra.mxu0 %v116
  %143 = vmatprep.subr.mxu0 0.0
  %144 = vmatpush1.msra.mxu0 %v115
  %145 = vmatprep.subr.mxu0 0.0
  %146 = vmatpush1.msra.mxu0 %v114
  %147 = vmatprep.subr.mxu0 0.0
  %148 = vmatpush1.msra.mxu0 %v113
  %149 = vmatprep.subr.mxu0 0.0
  %150 = vmatpush1.msra.mxu0 %v112
  %151 = vmatprep.subr.mxu0 0.0
  %152 = vmatpush1.msra.mxu0 %v111
  %153 = vmatprep.subr.mxu0 0.0
  %154 = vmatpush1.msra.mxu0 %v110
  %155 = vmatprep.subr.mxu0 0.0
  %156 = vmatpush1.msra.mxu0 %v109
  %157 = vmatprep.subr.mxu0 0.0
  %158 = vmatpush2.msra.mxu0 0.0
  %159 = vmatprep.subr.mxu0 0.0
  %160 = vmatpush2.msra.mxu0 0.0
  %161 = vmatprep.subr.mxu0 0.0
  %162 = vmatpush2.msra.mxu0 0.0
  %163 = vmatprep.subr.mxu0 0.0
  %164 = vmatpush2.msra.mxu0 0.0
  %165 = vmatprep.subr.mxu0 0.0
  %166 = vmatpush2.msra.mxu0 0.0
  %167 = vmatprep.subr.mxu0 0.0
  %168 = vmatpush2.msra.mxu0 0.0
  %169 = vmatprep.subr.mxu0 0.0
  %170 = vmatpush2.msra.mxu0 0.0
  %171 = vmatprep.subr.mxu0 0.0
  %172 = vmatpush2.msra.mxu0 0.0
  %173 = vmatprep.subr.mxu0 0.0
  %174 = vmatpush2.msra.mxu0 0.0
  %175 = vmatprep.subr.mxu0 0.0
  %176 = vmatpush2.msra.mxu0 0.0
  %177 = vmatprep.subr.mxu0 0.0
  %178 = vmatpush2.msra.mxu0 0.0
  %179 = vmatprep.subr.mxu0 0.0
  %180 = vmatpush2.msra.mxu0 0.0
  %181 = vmatprep.subr.mxu0 0.0
  %182 = vmatpush2.msra.mxu0 0.0
  %183 = vmatprep.subr.mxu0 0.0
  %184 = vmatpush2.msra.mxu0 0.0
  %185 = vmatprep.subr.mxu0 0.0
  %186 = vmatpush2.msra.mxu0 0.0
  %187 = vmatprep.subr.mxu0 0.0
  %188 = vmatpush2.msra.mxu0 0.0
  %189 = vmatprep.mubr.f32.mxu0 0.0
  %190 = vmatmul.mubr.f32.gmra.mxu0 %v108
  %v191 = vpop.f32.mrf.mxu0
  %v192 = vadd.f32 0.0, %v191
  %v193 = vpop.f32.mrf.mxu0
  %194 = vdwg.mxu0
  %v195 = vld [vmem:[#allocation2] sm:$0x1]
  %v197 = vlaneseq
  %v198 = vshrl.u32 %v197, 7
  %v199 = vsub.s32 0, %v198
  %v200 = vrot.slane %v195, %v199
  %v202 = vadd.f32 %v192, %v200
  %vm203 = vcmask 7168
  %204 = vst.msk [vmem:[%s5] sm:$0xff] %vm203, %v202
  // Predicated region
  $region22: #{torch_mlp_forward.1} parent=0 // pred_check
    _
  $region23: #{torch_mlp_forward.1} parent=0 // pred_check_branch
    %206 = sbr.rel (0) target = $region25
  $region24: #{torch_mlp_forward.1} parent=0 // pred_region
    _
  $region25: #{torch_mlp_forward.1} parent=0 // pred_fallthru
    _
  // Predicated region
  $region26: #{torch_mlp_forward.1} parent=0 // pred_check
    _
  $region27: #{torch_mlp_forward.1} parent=0 // pred_check_branch
    %208 = sbr.rel (0) target = $region29
  $region28: #{torch_mlp_forward.1} parent=0 // pred_region
    _
  $region29: #{torch_mlp_forward.1} parent=0 // pred_fallthru
    _

</llo_original>
